<compile_context>
chip_gen: v7x
topology: tpu7x:2x2x1
jax: 0.10.0
libtpu: 0.0.40
codegen_flags: <defaults>
</compile_context>

<pallas_src>
import jax
import jax.numpy as jnp
from jax.experimental import pallas as pl
from jax.experimental.pallas import tpu as pltpu

BN_EPS = 1e-5


# ----------------------------- fused kernel -------------------------------- #

def _batchnorm(y, gamma, beta):
    # torch.nn.BatchNorm1d training-mode forward: biased variance, eps=1e-5.
    mu = jnp.mean(y, axis=0, keepdims=True)
    var = jnp.mean((y - mu) * (y - mu), axis=0, keepdims=True)
    scale = gamma * jax.lax.rsqrt(var + BN_EPS)          # fold gamma into rsqrt
    return y * scale + (beta - mu * scale)


def _encoder(a, h, w, b, gamma, beta):
    # message passing (A @ H) + linear, reassociated by feature widths.
    f_in, f_out = w.shape
    if f_in <= f_out:
        # (A @ H) @ W : cheaper when the feature width grows (enc1: 8 -> 32).
        m = jnp.dot(a, h, preferred_element_type=jnp.float32)
        z = jnp.dot(m, w, preferred_element_type=jnp.float32)
    else:
        # A @ (H @ W) : cheaper when the feature width shrinks (enc2: 32 -> 8).
        hw = jnp.dot(h, w, preferred_element_type=jnp.float32)
        z = jnp.dot(a, hw, preferred_element_type=jnp.float32)
    z = z + b
    return _batchnorm(jnp.tanh(z), gamma, beta)
    # dropout p=0 -> identity


def gae_kernel(a_ref, x_ref,
               w1_ref, b1_ref, g1_ref, be1_ref,
               w2_ref, b2_ref, g2_ref, be2_ref,
               gd_ref, bd_ref,
               dec_ref, emb_ref):
    a = a_ref[...]

    enc1 = _encoder(a, x_ref[...], w1_ref[...], b1_ref[...],
                    g1_ref[...], be1_ref[...])
    enc2 = _encoder(a, enc1, w2_ref[...], b2_ref[...],
                    g2_ref[...], be2_ref[...])

    # concat in-register, single contiguous store of the embedding slab
    e = jnp.concatenate([enc1, enc2], axis=1)
    emb_ref[...] = e

    # inner-product decoder: E @ E^T without materializing the transpose
    g = jax.lax.dot_general(e, e,
                            dimension_numbers=(((1,), (1,)), ((), ())),
                            preferred_element_type=jnp.float32)
    s = jax.nn.sigmoid(g)
    dec_ref[...] = _batchnorm(s, gd_ref[...], bd_ref[...])


# ----------------------------- wrapper -------------------------------------- #

def _full_spec(shape):
    # whole-array block (shapes are tiny; no grid / tiling needed)
    return pl.BlockSpec(shape, lambda: (0,) * len(shape))


def gae_forward(a, x, params):
    """Full GAE forward. Returns (decoded (N,N), embedding (N, hidden+encoded))."""
    n = a.shape[0]
    hidden = params["w1"].shape[1]
    encoded = params["w2"].shape[1]

    operands = (a, x,
                params["w1"], params["b1"], params["gamma1"], params["beta1"],
                params["w2"], params["b2"], params["gamma2"], params["beta2"],
                params["gamma_dec"], params["beta_dec"])

    decoded, embedding = pl.pallas_call(
        gae_kernel,
        out_shape=(jax.ShapeDtypeStruct((n, n), jnp.float32),
                   jax.ShapeDtypeStruct((n, hidden + encoded), jnp.float32)),
        in_specs=[_full_spec(op.shape) for op in operands],
        out_specs=(_full_spec((n, n)), _full_spec((n, hidden + encoded))),
    )(*operands)
    return decoded, embedding


# ----------------------------- main ----------------------------------------- #

if __name__ == "__main__":
    # small shapes consistent with the module
    number_nodes = 16
    input_size = 8
    hidden_size = 32
    encoded_size = 8

    key = jax.random.PRNGKey(0)
    k_a, k_x, k_w1, k_b1, k_w2, k_b2 = jax.random.split(key, 6)

    # dense weighted adjacency A[dst, src] (a few edges zeroed out for variety)
    a_dense = jax.random.uniform(k_a, (number_nodes, number_nodes), jnp.float32)
    mask = (jax.random.uniform(jax.random.PRNGKey(1),
                               (number_nodes, number_nodes)) > 0.5).astype(jnp.float32)
    adj = a_dense * mask

    x = jax.random.normal(k_x, (number_nodes, input_size), jnp.float32)

    # deterministic parameter init (nn.Linear-style uniform bound)
    def linear_init(kw, kb, fan_in, fan_out):
        bound = 1.0 / jnp.sqrt(jnp.float32(fan_in))
        w = jax.random.uniform(kw, (fan_in, fan_out), jnp.float32, -bound, bound)
        b = jax.random.uniform(kb, (1, fan_out), jnp.float32, -bound, bound)
        return w, b

    w1, b1 = linear_init(k_w1, k_b1, input_size, hidden_size)
    w2, b2 = linear_init(k_w2, k_b2, hidden_size, encoded_size)

    params = dict(
        w1=w1, b1=b1,
        gamma1=jnp.ones((1, hidden_size), jnp.float32),
        beta1=jnp.zeros((1, hidden_size), jnp.float32),
        w2=w2, b2=b2,
        gamma2=jnp.ones((1, encoded_size), jnp.float32),
        beta2=jnp.zeros((1, encoded_size), jnp.float32),
        gamma_dec=jnp.ones((1, number_nodes), jnp.float32),
        beta_dec=jnp.zeros((1, number_nodes), jnp.float32),
    )

    decoded, embedding = jax.jit(gae_forward)(adj, x, params)
    jax.block_until_ready((decoded, embedding))

    assert decoded.shape == (number_nodes, number_nodes)
    assert embedding.shape == (number_nodes, hidden_size + encoded_size)
    assert bool(jnp.all(jnp.isfinite(decoded))) and bool(jnp.all(jnp.isfinite(embedding)))
    print("KERNEL_OK")
</pallas_src>

<mosaic_0001>
module attributes {stable_mosaic.version = 11 : i64} {
  func.func @gae_kernel(%arg0: memref<16x16xf32, #tpu.memory_space<vmem>>, %arg1: memref<16x8xf32, #tpu.memory_space<vmem>>, %arg2: memref<8x32xf32, #tpu.memory_space<vmem>>, %arg3: memref<1x32xf32, #tpu.memory_space<vmem>>, %arg4: memref<1x32xf32, #tpu.memory_space<vmem>>, %arg5: memref<1x32xf32, #tpu.memory_space<vmem>>, %arg6: memref<32x8xf32, #tpu.memory_space<vmem>>, %arg7: memref<1x8xf32, #tpu.memory_space<vmem>>, %arg8: memref<1x8xf32, #tpu.memory_space<vmem>>, %arg9: memref<1x8xf32, #tpu.memory_space<vmem>>, %arg10: memref<1x16xf32, #tpu.memory_space<vmem>>, %arg11: memref<1x16xf32, #tpu.memory_space<vmem>>, %arg12: memref<16x16xf32, #tpu.memory_space<vmem>>, %arg13: memref<16x40xf32, #tpu.memory_space<vmem>>) attributes {dimension_semantics = [], scalar_prefetch = 0 : i64, scratch_operands = 0 : i64, tpu.core_type = #tpu.core_type<tc>} {
    %c0 = arith.constant 0 : index
    %c0_0 = arith.constant 0 : index
    %0 = vector.load %arg0[%c0, %c0_0] : memref<16x16xf32, #tpu.memory_space<vmem>>, vector<16x16xf32>
    %c0_1 = arith.constant 0 : index
    %c0_2 = arith.constant 0 : index
    %1 = vector.load %arg1[%c0_1, %c0_2] : memref<16x8xf32, #tpu.memory_space<vmem>>, vector<16x8xf32>
    %c0_3 = arith.constant 0 : index
    %c0_4 = arith.constant 0 : index
    %2 = vector.load %arg2[%c0_3, %c0_4] : memref<8x32xf32, #tpu.memory_space<vmem>>, vector<8x32xf32>
    %c0_5 = arith.constant 0 : index
    %c0_6 = arith.constant 0 : index
    %3 = vector.load %arg3[%c0_5, %c0_6] : memref<1x32xf32, #tpu.memory_space<vmem>>, vector<1x32xf32>
    %c0_7 = arith.constant 0 : index
    %c0_8 = arith.constant 0 : index
    %4 = vector.load %arg4[%c0_7, %c0_8] : memref<1x32xf32, #tpu.memory_space<vmem>>, vector<1x32xf32>
    %c0_9 = arith.constant 0 : index
    %c0_10 = arith.constant 0 : index
    %5 = vector.load %arg5[%c0_9, %c0_10] : memref<1x32xf32, #tpu.memory_space<vmem>>, vector<1x32xf32>
    %cst = arith.constant dense<0.000000e+00> : vector<16x8xf32>
    %6 = tpu.matmul %0, %1, %cst {dimension_numbers = #tpu.dot_dimension_numbers<[1], [0], [0], [1], [0, 0, 1, 1], [], []>} : vector<16x16xf32>, vector<16x8xf32>, vector<16x8xf32> -> vector<16x8xf32>
    %cst_11 = arith.constant dense<0.000000e+00> : vector<16x32xf32>
    %7 = tpu.matmul %6, %2, %cst_11 {dimension_numbers = #tpu.dot_dimension_numbers<[1], [0], [0], [1], [0, 0, 1, 1], [], []>} : vector<16x8xf32>, vector<8x32xf32>, vector<16x32xf32> -> vector<16x32xf32>
    %8 = vector.broadcast %3 : vector<1x32xf32> to vector<16x32xf32>
    %9 = arith.addf %7, %8 : vector<16x32xf32>
    %10 = math.tanh %9 : vector<16x32xf32>
    %cst_12 = arith.constant dense<0.000000e+00> : vector<32xf32>
    %11 = vector.multi_reduction <add>, %10, %cst_12 [0] : vector<16x32xf32> to vector<32xf32>
    %12 = vector.shape_cast %11 : vector<32xf32> to vector<1x32xf32>
    %cst_13 = arith.constant 1.600000e+01 : f32
    %13 = vector.broadcast %cst_13 : f32 to vector<1x32xf32>
    %14 = arith.divf %12, %13 : vector<1x32xf32>
    %15 = vector.broadcast %14 : vector<1x32xf32> to vector<16x32xf32>
    %16 = arith.subf %10, %15 : vector<16x32xf32>
    %17 = vector.broadcast %14 : vector<1x32xf32> to vector<16x32xf32>
    %18 = arith.subf %10, %17 : vector<16x32xf32>
    %19 = arith.mulf %16, %18 : vector<16x32xf32>
    %cst_14 = arith.constant dense<0.000000e+00> : vector<32xf32>
    %20 = vector.multi_reduction <add>, %19, %cst_14 [0] : vector<16x32xf32> to vector<32xf32>
    %21 = vector.shape_cast %20 : vector<32xf32> to vector<1x32xf32>
    %cst_15 = arith.constant 1.600000e+01 : f32
    %22 = vector.broadcast %cst_15 : f32 to vector<1x32xf32>
    %23 = arith.divf %21, %22 : vector<1x32xf32>
    %cst_16 = arith.constant 9.99999974E-6 : f32
    %24 = vector.broadcast %cst_16 : f32 to vector<1x32xf32>
    %25 = arith.addf %23, %24 : vector<1x32xf32>
    %26 = math.rsqrt %25 : vector<1x32xf32>
    %27 = arith.mulf %4, %26 : vector<1x32xf32>
    %28 = vector.broadcast %27 : vector<1x32xf32> to vector<16x32xf32>
    %29 = arith.mulf %10, %28 : vector<16x32xf32>
    %30 = arith.mulf %14, %27 : vector<1x32xf32>
    %31 = arith.subf %5, %30 : vector<1x32xf32>
    %32 = vector.broadcast %31 : vector<1x32xf32> to vector<16x32xf32>
    %33 = arith.addf %29, %32 : vector<16x32xf32>
    %c0_17 = arith.constant 0 : index
    %c0_18 = arith.constant 0 : index
    %34 = vector.load %arg6[%c0_17, %c0_18] : memref<32x8xf32, #tpu.memory_space<vmem>>, vector<32x8xf32>
    %c0_19 = arith.constant 0 : index
    %c0_20 = arith.constant 0 : index
    %35 = vector.load %arg7[%c0_19, %c0_20] : memref<1x8xf32, #tpu.memory_space<vmem>>, vector<1x8xf32>
    %c0_21 = arith.constant 0 : index
    %c0_22 = arith.constant 0 : index
    %36 = vector.load %arg8[%c0_21, %c0_22] : memref<1x8xf32, #tpu.memory_space<vmem>>, vector<1x8xf32>
    %c0_23 = arith.constant 0 : index
    %c0_24 = arith.constant 0 : index
    %37 = vector.load %arg9[%c0_23, %c0_24] : memref<1x8xf32, #tpu.memory_space<vmem>>, vector<1x8xf32>
    %cst_25 = arith.constant dense<0.000000e+00> : vector<16x8xf32>
    %38 = tpu.matmul %33, %34, %cst_25 {dimension_numbers = #tpu.dot_dimension_numbers<[1], [0], [0], [1], [0, 0, 1, 1], [], []>} : vector<16x32xf32>, vector<32x8xf32>, vector<16x8xf32> -> vector<16x8xf32>
    %cst_26 = arith.constant dense<0.000000e+00> : vector<16x8xf32>
    %39 = tpu.matmul %0, %38, %cst_26 {dimension_numbers = #tpu.dot_dimension_numbers<[1], [0], [0], [1], [0, 0, 1, 1], [], []>} : vector<16x16xf32>, vector<16x8xf32>, vector<16x8xf32> -> vector<16x8xf32>
    %40 = vector.broadcast %35 : vector<1x8xf32> to vector<16x8xf32>
    %41 = arith.addf %39, %40 : vector<16x8xf32>
    %42 = math.tanh %41 : vector<16x8xf32>
    %cst_27 = arith.constant dense<0.000000e+00> : vector<8xf32>
    %43 = vector.multi_reduction <add>, %42, %cst_27 [0] : vector<16x8xf32> to vector<8xf32>
    %44 = vector.shape_cast %43 : vector<8xf32> to vector<1x8xf32>
    %cst_28 = arith.constant 1.600000e+01 : f32
    %45 = vector.broadcast %cst_28 : f32 to vector<1x8xf32>
    %46 = arith.divf %44, %45 : vector<1x8xf32>
    %47 = vector.broadcast %46 : vector<1x8xf32> to vector<16x8xf32>
    %48 = arith.subf %42, %47 : vector<16x8xf32>
    %49 = vector.broadcast %46 : vector<1x8xf32> to vector<16x8xf32>
    %50 = arith.subf %42, %49 : vector<16x8xf32>
    %51 = arith.mulf %48, %50 : vector<16x8xf32>
    %cst_29 = arith.constant dense<0.000000e+00> : vector<8xf32>
    %52 = vector.multi_reduction <add>, %51, %cst_29 [0] : vector<16x8xf32> to vector<8xf32>
    %53 = vector.shape_cast %52 : vector<8xf32> to vector<1x8xf32>
    %cst_30 = arith.constant 1.600000e+01 : f32
    %54 = vector.broadcast %cst_30 : f32 to vector<1x8xf32>
    %55 = arith.divf %53, %54 : vector<1x8xf32>
    %cst_31 = arith.constant 9.99999974E-6 : f32
    %56 = vector.broadcast %cst_31 : f32 to vector<1x8xf32>
    %57 = arith.addf %55, %56 : vector<1x8xf32>
    %58 = math.rsqrt %57 : vector<1x8xf32>
    %59 = arith.mulf %36, %58 : vector<1x8xf32>
    %60 = vector.broadcast %59 : vector<1x8xf32> to vector<16x8xf32>
    %61 = arith.mulf %42, %60 : vector<16x8xf32>
    %62 = arith.mulf %46, %59 : vector<1x8xf32>
    %63 = arith.subf %37, %62 : vector<1x8xf32>
    %64 = vector.broadcast %63 : vector<1x8xf32> to vector<16x8xf32>
    %65 = arith.addf %61, %64 : vector<16x8xf32>
    %66 = tpu.concatenate %33, %65 in 1 : vector<16x32xf32>, vector<16x8xf32> -> vector<16x40xf32>
    %c0_32 = arith.constant 0 : index
    %c0_33 = arith.constant 0 : index
    %67 = vector.load %arg13[%c0_32, %c0_33] : memref<16x40xf32, #tpu.memory_space<vmem>>, vector<16x40xf32>
    tpu.vector_store %arg13[%c0_32, %c0_33], %66 {strides = array<i32>} : memref<16x40xf32, #tpu.memory_space<vmem>>, vector<16x40xf32>,
    %cst_34 = arith.constant dense<0.000000e+00> : vector<16x16xf32>
    %68 = tpu.matmul %66, %66, %cst_34 {dimension_numbers = #tpu.dot_dimension_numbers<[1], [1], [0], [0], [0, 0, 1, 0], [], []>} : vector<16x40xf32>, vector<16x40xf32>, vector<16x16xf32> -> vector<16x16xf32>
    %69 = arith.negf %68 : vector<16x16xf32>
    %70 = math.exp %69 : vector<16x16xf32>
    %cst_35 = arith.constant 1.000000e+00 : f32
    %71 = vector.broadcast %cst_35 : f32 to vector<16x16xf32>
    %72 = arith.addf %71, %70 : vector<16x16xf32>
    %73 = arith.divf %71, %72 : vector<16x16xf32>
    %c0_36 = arith.constant 0 : index
    %c0_37 = arith.constant 0 : index
    %74 = vector.load %arg10[%c0_36, %c0_37] : memref<1x16xf32, #tpu.memory_space<vmem>>, vector<1x16xf32>
    %c0_38 = arith.constant 0 : index
    %c0_39 = arith.constant 0 : index
    %75 = vector.load %arg11[%c0_38, %c0_39] : memref<1x16xf32, #tpu.memory_space<vmem>>, vector<1x16xf32>
    %cst_40 = arith.constant dense<0.000000e+00> : vector<16xf32>
    %76 = vector.multi_reduction <add>, %73, %cst_40 [0] : vector<16x16xf32> to vector<16xf32>
    %77 = vector.shape_cast %76 : vector<16xf32> to vector<1x16xf32>
    %cst_41 = arith.constant 1.600000e+01 : f32
    %78 = vector.broadcast %cst_41 : f32 to vector<1x16xf32>
    %79 = arith.divf %77, %78 : vector<1x16xf32>
    %80 = vector.broadcast %79 : vector<1x16xf32> to vector<16x16xf32>
    %81 = arith.subf %73, %80 : vector<16x16xf32>
    %82 = vector.broadcast %79 : vector<1x16xf32> to vector<16x16xf32>
    %83 = arith.subf %73, %82 : vector<16x16xf32>
    %84 = arith.mulf %81, %83 : vector<16x16xf32>
    %cst_42 = arith.constant dense<0.000000e+00> : vector<16xf32>
    %85 = vector.multi_reduction <add>, %84, %cst_42 [0] : vector<16x16xf32> to vector<16xf32>
    %86 = vector.shape_cast %85 : vector<16xf32> to vector<1x16xf32>
    %cst_43 = arith.constant 1.600000e+01 : f32
    %87 = vector.broadcast %cst_43 : f32 to vector<1x16xf32>
    %88 = arith.divf %86, %87 : vector<1x16xf32>
    %cst_44 = arith.constant 9.99999974E-6 : f32
    %89 = vector.broadcast %cst_44 : f32 to vector<1x16xf32>
    %90 = arith.addf %88, %89 : vector<1x16xf32>
    %91 = math.rsqrt %90 : vector<1x16xf32>
    %92 = arith.mulf %74, %91 : vector<1x16xf32>
    %93 = vector.broadcast %92 : vector<1x16xf32> to vector<16x16xf32>
    %94 = arith.mulf %73, %93 : vector<16x16xf32>
    %95 = arith.mulf %79, %92 : vector<1x16xf32>
    %96 = arith.subf %75, %95 : vector<1x16xf32>
    %97 = vector.broadcast %96 : vector<1x16xf32> to vector<16x16xf32>
    %98 = arith.addf %94, %97 : vector<16x16xf32>
    %c0_45 = arith.constant 0 : index
    %c0_46 = arith.constant 0 : index
    %99 = vector.load %arg12[%c0_45, %c0_46] : memref<16x16xf32, #tpu.memory_space<vmem>>, vector<16x16xf32>
    tpu.vector_store %arg12[%c0_45, %c0_46], %98 {strides = array<i32>} : memref<16x16xf32, #tpu.memory_space<vmem>>, vector<16x16xf32>,
    return
  }
}

</mosaic_0001>

<llo_original>
// kernel: gae_forward.1
$region0: #{gae_forward.1}
  #allocation0 [shape = 'u32[]', space=smem, size = 0x4, offset = 0x4, fixed_abs, tag = 'smem constant byte address 0x4 - core index']
  #allocation1 [shape = 'u32[144,128]{1,0:T(1,128)}', space=vmem, size = 0x12000, scoped, tag = 'internal scratch']
  %s0 = inlined_call_operand.vmem [shape: f32[16,16], index: 0, kind: input, shape index: {}]
  %s1 = inlined_call_operand.vmem [shape: f32[16,8], index: 1, kind: input, shape index: {}]
  %s2 = inlined_call_operand.vmem [shape: f32[8,32], index: 2, kind: input, shape index: {}]
  %s3 = inlined_call_operand.vmem [shape: f32[1,32], index: 3, kind: input, shape index: {}]
  %s4 = inlined_call_operand.vmem [shape: f32[1,32], index: 4, kind: input, shape index: {}]
  %s5 = inlined_call_operand.vmem [shape: f32[1,32], index: 5, kind: input, shape index: {}]
  %s6 = inlined_call_operand.vmem [shape: f32[32,8], index: 6, kind: input, shape index: {}]
  %s7 = inlined_call_operand.vmem [shape: f32[1,8], index: 7, kind: input, shape index: {}]
  %s8 = inlined_call_operand.vmem [shape: f32[1,8], index: 8, kind: input, shape index: {}]
  %s9 = inlined_call_operand.vmem [shape: f32[1,8], index: 9, kind: input, shape index: {}]
  %s10 = inlined_call_operand.vmem [shape: f32[1,16], index: 10, kind: input, shape index: {}]
  %s11 = inlined_call_operand.vmem [shape: f32[1,16], index: 11, kind: input, shape index: {}]
  %s12 = inlined_call_operand.hbm [shape: f32[16,16], index: 12, kind: output, shape index: {0}]
  %s13 = inlined_call_operand.hbm [shape: f32[16,40], index: 13, kind: output, shape index: {1}]
  %14 = xla_tuple %s12, %s13
  %s15 = sld [smem:[#allocation0]]
  $region66: #{gae_forward.1} parent=0
    _
  %s17 = ssub.s32 1, %s15
  %s18 = scalar_select 0, %s17, %s15
  $region1: #{gae_forward.1} parent=0
    #allocation2 [shape = 'u8[8192]{0}', space=vmem, size = 0x2000, scoped, tag = 'output window, operand 0, single buffered']
    #allocation3 [shape = 's32[1]{0}', space=sflag, size = 0x4, scoped, tag = 'scoped memory for gae_forward.1']
    #allocation4 [shape = 'u8[8192]{0}', space=vmem, size = 0x2000, scoped, tag = 'output window, operand 1, single buffered']
    #allocation5 [shape = 's32[1]{0}', space=sflag, size = 0x4, scoped, tag = 'scoped memory for gae_forward.1']
    %19 = vsyncpa [#allocation3], 0
    %20 = vsyncpa [#allocation5], 0
    // Predicated region
    $region2: #{gae_forward.1} parent=1 // pred_check
      _
    $region3: #{gae_forward.1} parent=1 // pred_check_branch
      %22 = sbr.rel (0) target = $region5
    $region4: #{gae_forward.1} parent=1 // pred_region
      _
    $region5: #{gae_forward.1} parent=1 // pred_fallthru
      _
    // Predicated region
    $region6: #{gae_forward.1} parent=1 // pred_check
      _
    $region7: #{gae_forward.1} parent=1 // pred_check_branch
      %24 = sbr.rel (0) target = $region9
    $region8: #{gae_forward.1} parent=1 // pred_region
      _
    $region9: #{gae_forward.1} parent=1 // pred_fallthru
      _
    // Predicated region
    $region10: #{gae_forward.1} parent=1 // pred_check
      _
    $region11: #{gae_forward.1} parent=1 // pred_check_branch
      %26 = sbr.rel (0) target = $region13
    $region12: #{gae_forward.1} parent=1 // pred_region
      _
    $region13: #{gae_forward.1} parent=1 // pred_fallthru
      _
    // Predicated region
    $region14: #{gae_forward.1} parent=1 // pred_check
      _
    $region15: #{gae_forward.1} parent=1 // pred_check_branch
      %28 = sbr.rel (0) target = $region17
    $region16: #{gae_forward.1} parent=1 // pred_region
      _
    $region17: #{gae_forward.1} parent=1 // pred_fallthru
      _
    // Predicated region
    $region18: #{gae_forward.1} parent=1 // pred_check
      _
    $region19: #{gae_forward.1} parent=1 // pred_check_branch
      %30 = sbr.rel (0) target = $region21
    $region20: #{gae_forward.1} parent=1 // pred_region
      _
    $region21: #{gae_forward.1} parent=1 // pred_fallthru
      _
    // Predicated region
    $region22: #{gae_forward.1} parent=1 // pred_check
      _
    $region23: #{gae_forward.1} parent=1 // pred_check_branch
      %32 = sbr.rel (0) target = $region25
    $region24: #{gae_forward.1} parent=1 // pred_region
      _
    $region25: #{gae_forward.1} parent=1 // pred_fallthru
      _
    // Predicated region
    $region26: #{gae_forward.1} parent=1 // pred_check
      _
    $region27: #{gae_forward.1} parent=1 // pred_check_branch
      %34 = sbr.rel (0) target = $region29
    $region28: #{gae_forward.1} parent=1 // pred_region
      _
    $region29: #{gae_forward.1} parent=1 // pred_fallthru
      _
    // Predicated region
    $region30: #{gae_forward.1} parent=1 // pred_check
      _
    $region31: #{gae_forward.1} parent=1 // pred_check_branch
      %36 = sbr.rel (0) target = $region33
    $region32: #{gae_forward.1} parent=1 // pred_region
      _
    $region33: #{gae_forward.1} parent=1 // pred_fallthru
      _
    // Predicated region
    $region34: #{gae_forward.1} parent=1 // pred_check
      _
    $region35: #{gae_forward.1} parent=1 // pred_check_branch
      %38 = sbr.rel (0) target = $region37
    $region36: #{gae_forward.1} parent=1 // pred_region
      _
    $region37: #{gae_forward.1} parent=1 // pred_fallthru
      _
    // Predicated region
    $region38: #{gae_forward.1} parent=1 // pred_check
      _
    $region39: #{gae_forward.1} parent=1 // pred_check_branch
      %40 = sbr.rel (0) target = $region41
    $region40: #{gae_forward.1} parent=1 // pred_region
      _
    $region41: #{gae_forward.1} parent=1 // pred_fallthru
      _
    // Predicated region
    $region42: #{gae_forward.1} parent=1 // pred_check
      _
    $region43: #{gae_forward.1} parent=1 // pred_check_branch
      %42 = sbr.rel (0) target = $region45
    $region44: #{gae_forward.1} parent=1 // pred_region
      _
    $region45: #{gae_forward.1} parent=1 // pred_fallthru
      _
    // Predicated region
    $region46: #{gae_forward.1} parent=1 // pred_check
      _
    $region47: #{gae_forward.1} parent=1 // pred_check_branch
      %44 = sbr.rel (0) target = $region49
    $region48: #{gae_forward.1} parent=1 // pred_region
      _
    $region49: #{gae_forward.1} parent=1 // pred_fallthru
      _
    %v45 = vld [vmem:[%s0] sm:$0xff]
    %v46 = vld [vmem:[%s0 + $0x8] sm:$0xff]
    %v47 = vld [vmem:[%s1] sm:$0xff]
    %v48 = vld [vmem:[%s1 + $0x8] sm:$0xff]
    %v49 = vld [vmem:[%s2] sm:$0xff]
    %v50 = vld [vmem:[%s3] sm:$0x1]
    %v51 = vld [vmem:[%s4] sm:$0x1]
    %v52 = vld [vmem:[%s5] sm:$0x1]
    %vm53 = vcmask 130048
    %v55 = vsel %vm53, %v45, 0
    %v58 = vsel %vm53, %v46, 0
    %60 = vmatprep.subr.mxu0 0.0
    %61 = vmatpush1.msra.mxu0 %v47
    %62 = vmatprep.subr.mxu0 0.0
    %63 = vmatpush1.msra.mxu0 %v48
    %64 = vmatprep.subr.mxu0 0.0
    %65 = vmatpush1.msra.mxu0 0.0
    %66 = vmatprep.subr.mxu0 0.0
    %67 = vmatpush1.msra.mxu0 0.0
    %68 = vmatprep.subr.mxu0 0.0
    %69 = vmatpush1.msra.mxu0 0.0
    %70 = vmatprep.subr.mxu0 0.0
    %71 = vmatpush1.msra.mxu0 0.0
    %72 = vmatprep.subr.mxu0 0.0
    %73 = vmatpush1.msra.mxu0 0.0
    %74 = vmatprep.subr.mxu0 0.0
    %75 = vmatpush1.msra.mxu0 0.0
    %76 = vmatprep.subr.mxu0 0.0
    %77 = vmatpush1.msra.mxu0 0.0
    %78 = vmatprep.subr.mxu0 0.0
    %79 = vmatpush1.msra.mxu0 0.0
    %80 = vmatprep.subr.mxu0 0.0
    %81 = vmatpush1.msra.mxu0 0.0
    %82 = vmatprep.subr.mxu0 0.0
    %83 = vmatpush1.msra.mxu0 0.0
    %84 = vmatprep.subr.mxu0 0.0
    %85 = vmatpush1.msra.mxu0 0.0
    %86 = vmatprep.subr.mxu0 0.0
    %87 = vmatpush1.msra.mxu0 0.0
    %88 = vmatprep.subr.mxu0 0.0
    %89 = vmatpush1.msra.mxu0 0.0
    %90 = vmatprep.subr.mxu0 0.0
    %91 = vmatpush1.msra.mxu0 0.0
    %92 = vmatprep.subr.mxu0 0.0
    %93 = vmatpush1.msra.mxu0 0.0
    %94 = vmatprep.subr.mxu0 0.0
    %95 = vmatpush1.msra.mxu0 0.0
    %96 = vmatprep.subr.mxu0 0.0
    %97 = vmatpush1.msra.mxu0 0.0
    %98 = vmatprep.subr.mxu0 0.0
    %99 = vmatpush1.msra.mxu0 0.0
    %100 = vmatprep.subr.mxu0 0.0
    %101 = vmatpush1.msra.mxu0 0.0
    %102 = vmatprep.subr.mxu0 0.0
    %103 = vmatpush1.msra.mxu0 0.0
    %104 = vmatprep.subr.mxu0 0.0
    %105 = vmatpush1.msra.mxu0 0.0
    %106 = vmatprep.subr.mxu0 0.0
    %107 = vmatpush1.msra.mxu0 0.0
    %108 = vmatprep.subr.mxu0 0.0
    %109 = vmatpush1.msra.mxu0 0.0
    %110 = vmatprep.subr.mxu0 0.0
    %111 = vmatpush1.msra.mxu0 0.0
    %112 = vmatprep.subr.mxu0 0.0
    %113 = vmatpush1.msra.mxu0 0.0
    %114 = vmatprep.subr.mxu0 0.0
    %115 = vmatpush1.msra.mxu0 0.0
    %116 = vmatprep.subr.mxu0 0.0
    %117 = vmatpush1.msra.mxu0 0.0
    %118 = vmatprep.subr.mxu0 0.0
    %119 = vmatpush1.msra.mxu0 0.0
    %120 = vmatprep.subr.mxu0 0.0
    %121 = vmatpush1.msra.mxu0 0.0
    %122 = vmatprep.subr.mxu0 0.0
    %123 = vmatpush1.msra.mxu0 0.0
    %124 = vmatprep.mubr.f32.mxu0 0.0
    %125 = vmatmul.mubr.f32.gmra.mrb[0].mxu0 %v55
    %v126 = vpop.f32.mrb[0].mxu0
    %v127 = vadd.f32 0.0, %v126
    %v128 = vpop.f32.mrb[0].mxu0
    %129 = vmatprep.mubr.f32.mxu0 0.0
    %130 = vmatmul.mubr.f32.gmra.mrb[0].mxu0 %v58
    %v131 = vpop.f32.mrb[0].mxu0
    %v132 = vadd.f32 0.0, %v131
    %v133 = vpop.f32.mrb[0].mxu0
    %134 = vdwg.mxu0
    %v136 = vlaneseq
    %v137 = vshrl.u32 %v136, 7
    %v138 = vsub.s32 0, %v137
    %v139 = vrot.slane %v50, %v138
    %vm141 = vcmask 64512
    %v143 = vsel %vm141, %v127, 0
    %v146 = vsel %vm141, %v132, 0
    %148 = vmatprep.subr.mxu0 0.0
    %149 = vmatpush1.msra.mxu0 %v49
    %150 = vmatprep.subr.mxu0 0.0
    %151 = vmatpush1.msra.mxu0 0.0
    %152 = vmatprep.subr.mxu0 0.0
    %153 = vmatpush1.msra.mxu0 0.0
    %154 = vmatprep.subr.mxu0 0.0
    %155 = vmatpush1.msra.mxu0 0.0
    %156 = vmatprep.subr.mxu0 0.0
    %157 = vmatpush1.msra.mxu0 0.0
    %158 = vmatprep.subr.mxu0 0.0
    %159 = vmatpush1.msra.mxu0 0.0
    %160 = vmatprep.subr.mxu0 0.0
    %161 = vmatpush1.msra.mxu0 0.0
    %162 = vmatprep.subr.mxu0 0.0
    %163 = vmatpush1.msra.mxu0 0.0
    %164 = vmatprep.subr.mxu0 0.0
    %165 = vmatpush1.msra.mxu0 0.0
    %166 = vmatprep.subr.mxu0 0.0
    %167 = vmatpush1.msra.mxu0 0.0
    %168 = vmatprep.subr.mxu0 0.0
    %169 = vmatpush1.msra.mxu0 0.0
    %170 = vmatprep.subr.mxu0 0.0
    %171 = vmatpush1.msra.mxu0 0.0
    %172 = vmatprep.subr.mxu0 0.0
    %173 = vmatpush1.msra.mxu0 0.0
    %174 = vmatprep.subr.mxu0 0.0
    %175 = vmatpush1.msra.mxu0 0.0
    %176 = vmatprep.subr.mxu0 0.0
    %177 = vmatpush1.msra.mxu0 0.0
    %178 = vmatprep.subr.mxu0 0.0
    %179 = vmatpush1.msra.mxu0 0.0
    %180 = vmatprep.subr.mxu0 0.0
    %181 = vmatpush1.msra.mxu0 0.0
    %182 = vmatprep.subr.mxu0 0.0
    %183 = vmatpush1.msra.mxu0 0.0
    %184 = vmatprep.subr.mxu0 0.0
    %185 = vmatpush1.msra.mxu0 0.0
    %186 = vmatprep.subr.mxu0 0.0
    %187 = vmatpush1.msra.mxu0 0.0
    %188 = vmatprep.subr.mxu0 0.0
    %189 = vmatpush1.msra.mxu0 0.0
    %190 = vmatprep.subr.mxu0 0.0
    %191 = vmatpush1.msra.mxu0 0.0
    %192 = vmatprep.subr.mxu0 0.0
    %193 = vmatpush1.msra.mxu0 0.0
    %194 = vmatprep.subr.mxu0 0.0
    %195 = vmatpush1.msra.mxu0 0.0
    %196 = vmatprep.subr.mxu0 0.0
    %197 = vmatpush1.msra.mxu0 0.0
    %198 = vmatprep.subr.mxu0 0.0
    %199 = vmatpush1.msra.mxu0 0.0
    %200 = vmatprep.subr.mxu0 0.0
    %201 = vmatpush1.msra.mxu0 0.0
    %202 = vmatprep.subr.mxu0 0.0
    %203 = vmatpush1.msra.mxu0 0.0
    %204 = vmatprep.subr.mxu0 0.0
    %205 = vmatpush1.msra.mxu0 0.0
    %206 = vmatprep.subr.mxu0 0.0
    %207 = vmatpush1.msra.mxu0 0.0
    %208 = vmatprep.subr.mxu0 0.0
    %209 = vmatpush1.msra.mxu0 0.0
    %210 = vmatprep.subr.mxu0 0.0
    %211 = vmatpush1.msra.mxu0 0.0
    %212 = vmatprep.mubr.f32.mxu0 0.0
    %213 = vmatmul.mubr.f32.gmra.mrb[0].mxu0 %v143
    %v214 = vpop.f32.mrb[0].mxu0
    %v215 = vadd.f32 %v139, %v214
    %v216 = vpop.f32.mrb[0].mxu0
    %217 = vmatprep.mubr.f32.mxu0 0.0
    %218 = vmatmul.mubr.f32.gmra.mrb[0].mxu0 %v146
    %v219 = vpop.f32.mrb[0].mxu0
    %v220 = vadd.f32 %v139, %v219
    %v221 = vpop.f32.mrb[0].mxu0
    %222 = vdwg.mxu0
    %v223 = vtanh.pop %v215
    %v224 = vtanh.pop %v220
    %vm225 = vcmask 261120
    %v226 = vsel %vm225, %v223, 0.0
    %v227 = vsel %vm225, %v224, 0.0
    %v228 = vadd.f32 %v226, %v227
    %v229 = vrot.slane %v228, 4
    %v230 = vadd.f32 %v228, %v229
    %v231 = vrot.slane %v230, 2
    %v232 = vadd.f32 %v230, %v231
    %v233 = vrot.slane %v232, 1
    %v234 = vadd.f32 %v232, %v233
    %v235 = vrcp.pop 16.0
    %v236 = vmul.f32 %v234, %v235
    %v237 = vsub.f32 %v223, %v236
    %v238 = vsub.f32 %v224, %v236
    %v239 = vmul.f32 %v237, %v237
    %v240 = vmul.f32 %v238, %v238
    %v241 = vsel %vm225, %v239, 0.0
    %v242 = vsel %vm225, %v240, 0.0
    %v243 = vadd.f32 %v241, %v242
    %v244 = vrot.slane %v243, 4
    %v245 = vadd.f32 %v243, %v244
    %v246 = vrot.slane %v245, 2
    %v247 = vadd.f32 %v245, %v246
    %v248 = vrot.slane %v247, 1
    %v249 = vadd.f32 %v247, %v248
    %v250 = vmul.f32 %v249, %v235
    %v251 = vadd.f32 %v250, 1e-05
    %v252 = vrsqrt.pop %v251
    %v253 = vmul.f32 %v51, %v252
    %v255 = vlaneseq
    %v256 = vshrl.u32 %v255, 7
    %v257 = vsub.s32 0, %v256
    %v258 = vrot.slane %v253, %v257
    %v260 = vmul.f32 %v223, %v258
    %v261 = vmul.f32 %v224, %v258
    %v262 = vmul.f32 %v236, %v253
    %v263 = vsub.f32 %v52, %v262
    %v265 = vlaneseq
    %v266 = vshrl.u32 %v265, 7
    %v267 = vsub.s32 0, %v266
    %v268 = vrot.slane %v263, %v267
    %v270 = vadd.f32 %v260, %v268
    %v271 = vadd.f32 %v261, %v268
    %v272 = vld [vmem:[%s6] sm:$0xff]
    %v273 = vld [vmem:[%s6 + $0x8] sm:$0xff]
    %v274 = vld [vmem:[%s6 + $0x10] sm:$0xff]
    %v275 = vld [vmem:[%s6 + $0x18] sm:$0xff]
    %v276 = vld [vmem:[%s7] sm:$0x1]
    %v277 = vld [vmem:[%s8] sm:$0x1]
    %v278 = vld [vmem:[%s9] sm:$0x1]
    %v280 = vsel %vm225, %v270, 0
    %v283 = vsel %vm225, %v271, 0
    %285 = vmatprep.subr.mxu0 0.0
    %286 = vmatpush1.msra.mxu0 %v272
    %287 = vmatprep.subr.mxu0 0.0
    %288 = vmatpush1.msra.mxu0 %v273
    %289 = vmatprep.subr.mxu0 0.0
    %290 = vmatpush1.msra.mxu0 %v274
    %291 = vmatprep.subr.mxu0 0.0
    %292 = vmatpush1.msra.mxu0 %v275
    %293 = vmatprep.subr.mxu0 0.0
    %294 = vmatpush1.msra.mxu0 0.0
    %295 = vmatprep.subr.mxu0 0.0
    %296 = vmatpush1.msra.mxu0 0.0
    %297 = vmatprep.subr.mxu0 0.0
    %298 = vmatpush1.msra.mxu0 0.0
    %299 = vmatprep.subr.mxu0 0.0
    %300 = vmatpush1.msra.mxu0 0.0
    %301 = vmatprep.subr.mxu0 0.0
    %302 = vmatpush1.msra.mxu0 0.0
    %303 = vmatprep.subr.mxu0 0.0
    %304 = vmatpush1.msra.mxu0 0.0
    %305 = vmatprep.subr.mxu0 0.0
    %306 = vmatpush1.msra.mxu0 0.0
    %307 = vmatprep.subr.mxu0 0.0
    %308 = vmatpush1.msra.mxu0 0.0
    %309 = vmatprep.subr.mxu0 0.0
    %310 = vmatpush1.msra.mxu0 0.0
    %311 = vmatprep.subr.mxu0 0.0
    %312 = vmatpush1.msra.mxu0 0.0
    %313 = vmatprep.subr.mxu0 0.0
    %314 = vmatpush1.msra.mxu0 0.0
    %315 = vmatprep.subr.mxu0 0.0
    %316 = vmatpush1.msra.mxu0 0.0
    %317 = vmatprep.subr.mxu0 0.0
    %318 = vmatpush1.msra.mxu0 0.0
    %319 = vmatprep.subr.mxu0 0.0
    %320 = vmatpush1.msra.mxu0 0.0
    %321 = vmatprep.subr.mxu0 0.0
    %322 = vmatpush1.msra.mxu0 0.0
    %323 = vmatprep.subr.mxu0 0.0
    %324 = vmatpush1.msra.mxu0 0.0
    %325 = vmatprep.subr.mxu0 0.0
    %326 = vmatpush1.msra.mxu0 0.0
    %327 = vmatprep.subr.mxu0 0.0
    %328 = vmatpush1.msra.mxu0 0.0
    %329 = vmatprep.subr.mxu0 0.0
    %330 = vmatpush1.msra.mxu0 0.0
    %331 = vmatprep.subr.mxu0 0.0
    %332 = vmatpush1.msra.mxu0 0.0
    %333 = vmatprep.subr.mxu0 0.0
    %334 = vmatpush1.msra.mxu0 0.0
    %335 = vmatprep.subr.mxu0 0.0
    %336 = vmatpush1.msra.mxu0 0.0
    %337 = vmatprep.subr.mxu0 0.0
    %338 = vmatpush1.msra.mxu0 0.0
    %339 = vmatprep.subr.mxu0 0.0
    %340 = vmatpush1.msra.mxu0 0.0
    %341 = vmatprep.subr.mxu0 0.0
    %342 = vmatpush1.msra.mxu0 0.0
    %343 = vmatprep.subr.mxu0 0.0
    %344 = vmatpush1.msra.mxu0 0.0
    %345 = vmatprep.subr.mxu0 0.0
    %346 = vmatpush1.msra.mxu0 0.0
    %347 = vmatprep.subr.mxu0 0.0
    %348 = vmatpush1.msra.mxu0 0.0
    %349 = vmatprep.mubr.f32.mxu0 0.0
    %350 = vmatmul.mubr.f32.gmra.mrb[0].mxu0 %v280
    %v351 = vpop.f32.mrb[0].mxu0
    %v352 = vadd.f32 0.0, %v351
    %v353 = vpop.f32.mrb[0].mxu0
    %354 = vmatprep.mubr.f32.mxu0 0.0
    %355 = vmatmul.mubr.f32.gmra.mrb[0].mxu0 %v283
    %v356 = vpop.f32.mrb[0].mxu0
    %v357 = vadd.f32 0.0, %v356
    %v358 = vpop.f32.mrb[0].mxu0
    %359 = vdwg.mxu0
    %v361 = vlaneseq
    %v362 = vshrl.u32 %v361, 7
    %v363 = vsub.s32 0, %v362
    %v364 = vrot.slane %v276, %v363
    %366 = vmatprep.subr.mxu0 0.0
    %367 = vmatpush1.msra.mxu0 %v352
    %368 = vmatprep.subr.mxu0 0.0
    %369 = vmatpush1.msra.mxu0 %v357
    %370 = vmatprep.subr.mxu0 0.0
    %371 = vmatpush1.msra.mxu0 0.0
    %372 = vmatprep.subr.mxu0 0.0
    %373 = vmatpush1.msra.mxu0 0.0
    %374 = vmatprep.subr.mxu0 0.0
    %375 = vmatpush1.msra.mxu0 0.0
    %376 = vmatprep.subr.mxu0 0.0
    %377 = vmatpush1.msra.mxu0 0.0
    %378 = vmatprep.subr.mxu0 0.0
    %379 = vmatpush1.msra.mxu0 0.0
    %380 = vmatprep.subr.mxu0 0.0
    %381 = vmatpush1.msra.mxu0 0.0
    %382 = vmatprep.subr.mxu0 0.0
    %383 = vmatpush1.msra.mxu0 0.0
    %384 = vmatprep.subr.mxu0 0.0
    %385 = vmatpush1.msra.mxu0 0.0
    %386 = vmatprep.subr.mxu0 0.0
    %387 = vmatpush1.msra.mxu0 0.0
    %388 = vmatprep.subr.mxu0 0.0
    %389 = vmatpush1.msra.mxu0 0.0
    %390 = vmatprep.subr.mxu0 0.0
    %391 = vmatpush1.msra.mxu0 0.0
    %392 = vmatprep.subr.mxu0 0.0
    %393 = vmatpush1.msra.mxu0 0.0
    %394 = vmatprep.subr.mxu0 0.0
    %395 = vmatpush1.msra.mxu0 0.0
    %396 = vmatprep.subr.mxu0 0.0
    %397 = vmatpush1.msra.mxu0 0.0
    %398 = vmatprep.subr.mxu0 0.0
    %399 = vmatpush1.msra.mxu0 0.0
    %400 = vmatprep.subr.mxu0 0.0
    %401 = vmatpush1.msra.mxu0 0.0
    %402 = vmatprep.subr.mxu0 0.0
    %403 = vmatpush1.msra.mxu0 0.0
    %404 = vmatprep.subr.mxu0 0.0
    %405 = vmatpush1.msra.mxu0 0.0
    %406 = vmatprep.subr.mxu0 0.0
    %407 = vmatpush1.msra.mxu0 0.0
    %408 = vmatprep.subr.mxu0 0.0
    %409 = vmatpush1.msra.mxu0 0.0
    %410 = vmatprep.subr.mxu0 0.0
    %411 = vmatpush1.msra.mxu0 0.0
    %412 = vmatprep.subr.mxu0 0.0
    %413 = vmatpush1.msra.mxu0 0.0
    %414 = vmatprep.subr.mxu0 0.0
    %415 = vmatpush1.msra.mxu0 0.0
    %416 = vmatprep.subr.mxu0 0.0
    %417 = vmatpush1.msra.mxu0 0.0
    %418 = vmatprep.subr.mxu0 0.0
    %419 = vmatpush1.msra.mxu0 0.0
    %420 = vmatprep.subr.mxu0 0.0
    %421 = vmatpush1.msra.mxu0 0.0
    %422 = vmatprep.subr.mxu0 0.0
    %423 = vmatpush1.msra.mxu0 0.0
    %424 = vmatprep.subr.mxu0 0.0
    %425 = vmatpush1.msra.mxu0 0.0
    %426 = vmatprep.subr.mxu0 0.0
    %427 = vmatpush1.msra.mxu0 0.0
    %428 = vmatprep.subr.mxu0 0.0
    %429 = vmatpush1.msra.mxu0 0.0
    %430 = vmatprep.mubr.f32.mxu0 0.0
    %431 = vmatmul.mubr.f32.gmra.mrb[0].mxu0 %v55
    %v432 = vpop.f32.mrb[0].mxu0
    %v433 = vadd.f32 %v364, %v432
    %v434 = vpop.f32.mrb[0].mxu0
    %435 = vmatprep.mubr.f32.mxu0 0.0
    %436 = vmatmul.mubr.f32.gmra.mrb[0].mxu0 %v58
    %v437 = vpop.f32.mrb[0].mxu0
    %v438 = vadd.f32 %v364, %v437
    %v439 = vpop.f32.mrb[0].mxu0
    %440 = vdwg.mxu0
    %v441 = vtanh.pop %v433
    %v442 = vtanh.pop %v438
    %v443 = vsel %vm141, %v441, 0.0
    %v444 = vsel %vm141, %v442, 0.0
    %v445 = vadd.f32 %v443, %v444
    %v446 = vrot.slane %v445, 4
    %v447 = vadd.f32 %v445, %v446
    %v448 = vrot.slane %v447, 2
    %v449 = vadd.f32 %v447, %v448
    %v450 = vrot.slane %v449, 1
    %v451 = vadd.f32 %v449, %v450
    %v452 = vmul.f32 %v451, %v235
    %v453 = vsub.f32 %v441, %v452
    %v454 = vsub.f32 %v442, %v452
    %v455 = vmul.f32 %v453, %v453
    %v456 = vmul.f32 %v454, %v454
    %v457 = vsel %vm141, %v455, 0.0
    %v458 = vsel %vm141, %v456, 0.0
    %v459 = vadd.f32 %v457, %v458
    %v460 = vrot.slane %v459, 4
    %v461 = vadd.f32 %v459, %v460
    %v462 = vrot.slane %v461, 2
    %v463 = vadd.f32 %v461, %v462
    %v464 = vrot.slane %v463, 1
    %v465 = vadd.f32 %v463, %v464
    %v466 = vmul.f32 %v465, %v235
    %v467 = vadd.f32 %v466, 1e-05
    %v468 = vrsqrt.pop %v467
    %v469 = vmul.f32 %v277, %v468
    %v471 = vlaneseq
    %v472 = vshrl.u32 %v471, 7
    %v473 = vsub.s32 0, %v472
    %v474 = vrot.slane %v469, %v473
    %v476 = vmul.f32 %v441, %v474
    %v477 = vmul.f32 %v442, %v474
    %v478 = vmul.f32 %v452, %v469
    %v479 = vsub.f32 %v278, %v478
    %v481 = vlaneseq
    %v482 = vshrl.u32 %v481, 7
    %v483 = vsub.s32 0, %v482
    %v484 = vrot.slane %v479, %v483
    %v486 = vadd.f32 %v476, %v484
    %v487 = vadd.f32 %v477, %v484
    %490 = vrot.lane.b32.xlu0 %v486, 32
    %v491 = vpop.permute.xlu0 %490
    %492 = vrot.lane.b32.xlu0 %v487, 32
    %v493 = vpop.permute.xlu0 %492
    %v496 = vsel %vm225, %v270, %v491
    %v497 = vsel %vm225, %v271, %v493
    %vm498 = vcmask 326656
    %499 = vst.msk [vmem:[#allocation4] sm:$0xff] %vm498, %v496
    %500 = vst.msk [vmem:[#allocation4 + $0x8] sm:$0xff] %vm498, %v497
    %v502 = vsel %vm498, %v496, 0
    %v505 = vsel %vm498, %v497, 0
    %507 = vmatprep.subr.mxu0 0.0
    %508 = vmatpush1.xpose.msra.mxu0 %v502
    %509 = vmatprep.subr.mxu0 0.0
    %510 = vmatpush1.xpose.msra.mxu0 %v505
    %511 = vmatprep.subr.mxu0 0.0
    %512 = vmatpush1.xpose.msra.mxu0 0.0
    %513 = vmatprep.subr.mxu0 0.0
    %514 = vmatpush1.xpose.msra.mxu0 0.0
    %515 = vmatprep.subr.mxu0 0.0
    %516 = vmatpush1.xpose.msra.mxu0 0.0
    %517 = vmatprep.subr.mxu0 0.0
    %518 = vmatpush1.xpose.msra.mxu0 0.0
    %519 = vmatprep.subr.mxu0 0.0
    %520 = vmatpush1.xpose.msra.mxu0 0.0
    %521 = vmatprep.subr.mxu0 0.0
    %522 = vmatpush1.xpose.msra.mxu0 0.0
    %523 = vmatprep.subr.mxu0 0.0
    %524 = vmatpush1.xpose.msra.mxu0 0.0
    %525 = vmatprep.subr.mxu0 0.0
    %526 = vmatpush1.xpose.msra.mxu0 0.0
    %527 = vmatprep.subr.mxu0 0.0
    %528 = vmatpush1.xpose.msra.mxu0 0.0
    %529 = vmatprep.subr.mxu0 0.0
    %530 = vmatpush1.xpose.msra.mxu0 0.0
    %531 = vmatprep.subr.mxu0 0.0
    %532 = vmatpush1.xpose.msra.mxu0 0.0
    %533 = vmatprep.subr.mxu0 0.0
    %534 = vmatpush1.xpose.msra.mxu0 0.0
    %535 = vmatprep.subr.mxu0 0.0
    %536 = vmatpush1.xpose.msra.mxu0 0.0
    %537 = vmatprep.subr.mxu0 0.0
    %538 = vmatpush1.xpose.msra.mxu0 0.0
    %539 = vmatprep.subr.mxu0 0.0
    %540 = vmatpush1.xpose.msra.mxu0 0.0
    %541 = vmatprep.subr.mxu0 0.0
    %542 = vmatpush1.xpose.msra.mxu0 0.0
    %543 = vmatprep.subr.mxu0 0.0
    %544 = vmatpush1.xpose.msra.mxu0 0.0
    %545 = vmatprep.subr.mxu0 0.0
    %546 = vmatpush1.xpose.msra.mxu0 0.0
    %547 = vmatprep.subr.mxu0 0.0
    %548 = vmatpush1.xpose.msra.mxu0 0.0
    %549 = vmatprep.subr.mxu0 0.0
    %550 = vmatpush1.xpose.msra.mxu0 0.0
    %551 = vmatprep.subr.mxu0 0.0
    %552 = vmatpush1.xpose.msra.mxu0 0.0
    %553 = vmatprep.subr.mxu0 0.0
    %554 = vmatpush1.xpose.msra.mxu0 0.0
    %555 = vmatprep.subr.mxu0 0.0
    %556 = vmatpush1.xpose.msra.mxu0 0.0
    %557 = vmatprep.subr.mxu0 0.0
    %558 = vmatpush1.xpose.msra.mxu0 0.0
    %559 = vmatprep.subr.mxu0 0.0
    %560 = vmatpush1.xpose.msra.mxu0 0.0
    %561 = vmatprep.subr.mxu0 0.0
    %562 = vmatpush1.xpose.msra.mxu0 0.0
    %563 = vmatprep.subr.mxu0 0.0
    %564 = vmatpush1.xpose.msra.mxu0 0.0
    %565 = vmatprep.subr.mxu0 0.0
    %566 = vmatpush1.xpose.msra.mxu0 0.0
    %567 = vmatprep.subr.mxu0 0.0
    %568 = vmatpush1.xpose.msra.mxu0 0.0
    %569 = vmatprep.subr.mxu0 0.0
    %570 = vmatpush1.xpose.msra.mxu0 0.0
    %571 = vmatprep.mubr.f32.mxu0 0.0
    %572 = vmatmul.mubr.f32.gmra.mrb[0].mxu0 %v502
    %v573 = vpop.f32.mrb[0].mxu0
    %v574 = vadd.f32 0.0, %v573
    %v575 = vpop.f32.mrb[0].mxu0
    %576 = vmatprep.mubr.f32.mxu0 0.0
    %577 = vmatmul.mubr.f32.gmra.mrb[0].mxu0 %v505
    %v578 = vpop.f32.mrb[0].mxu0
    %v579 = vadd.f32 0.0, %v578
    %v580 = vpop.f32.mrb[0].mxu0
    %581 = vdwg.mxu0
    %v582 = vxor.u32 %v574, 2147483648
    %v583 = vxor.u32 %v579, 2147483648
    %v584 = vmul.f32 %v582, 1.442695
    %v585 = vpow.pop %v584
    %v586 = vmul.f32 %v583, 1.442695
    %v587 = vpow.pop %v586
    %v588 = vadd.f32 %v585, 1.0
    %v589 = vadd.f32 %v587, 1.0
    %v590 = vrcp.pop %v588
    %v591 = vmul.f32 1.0, %v590
    %v592 = vrcp.pop %v589
    %v593 = vmul.f32 1.0, %v592
    %v594 = vld [vmem:[%s10] sm:$0x1]
    %v595 = vld [vmem:[%s11] sm:$0x1]
    %v596 = vsel %vm53, %v591, 0.0
    %v597 = vsel %vm53, %v593, 0.0
    %v598 = vadd.f32 %v596, %v597
    %v599 = vrot.slane %v598, 4
    %v600 = vadd.f32 %v598, %v599
    %v601 = vrot.slane %v600, 2
    %v602 = vadd.f32 %v600, %v601
    %v603 = vrot.slane %v602, 1
    %v604 = vadd.f32 %v602, %v603
    %v605 = vmul.f32 %v604, %v235
    %v606 = vsub.f32 %v591, %v605
    %v607 = vsub.f32 %v593, %v605
    %v608 = vmul.f32 %v606, %v606
    %v609 = vmul.f32 %v607, %v607
    %v610 = vsel %vm53, %v608, 0.0
    %v611 = vsel %vm53, %v609, 0.0
    %v612 = vadd.f32 %v610, %v611
    %v613 = vrot.slane %v612, 4
    %v614 = vadd.f32 %v612, %v613
    %v615 = vrot.slane %v614, 2
    %v616 = vadd.f32 %v614, %v615
    %v617 = vrot.slane %v616, 1
    %v618 = vadd.f32 %v616, %v617
    %v619 = vmul.f32 %v618, %v235
    %v620 = vadd.f32 %v619, 1e-05
    %v621 = vrsqrt.pop %v620
    %v622 = vmul.f32 %v594, %v621
    %v624 = vlaneseq
    %v625 = vshrl.u32 %v624, 7
    %v626 = vsub.s32 0, %v625
    %v627 = vrot.slane %v622, %v626
    %v629 = vmul.f32 %v591, %v627
    %v630 = vmul.f32 %v593, %v627
    %v631 = vmul.f32 %v605, %v622
    %v632 = vsub.f32 %v595, %v631
    %v634 = vlaneseq
    %v635 = vshrl.u32 %v634, 7
    %v636 = vsub.s32 0, %v635
    %v637 = vrot.slane %v632, %v636
    %v639 = vadd.f32 %v629, %v637
    %v640 = vadd.f32 %v630, %v637
    %641 = vst.msk [vmem:[#allocation2] sm:$0xff] %vm53, %v639
    %642 = vst.msk [vmem:[#allocation2 + $0x8] sm:$0xff] %vm53, %v640
    // Predicated region
    $region50: #{gae_forward.1} parent=1 // pred_check
      _
    $region51: #{gae_forward.1} parent=1 // pred_check_branch
      %644 = sbr.rel (0) target = $region53
    $region52: #{gae_forward.1} parent=1 // pred_region
      %s646 = ssub.s32 256, 256
      %647 = vsyncadd [#allocation3], %s646
      %s648 = sshll.u32 [#allocation2], 4
      %s649 = int_to_ptr.vmem [resolvable:$true] %s648
      %654 = dma.vmem_to_hbm [thread:$0]  %s649, 256, %s12, [#allocation3], 128, 128, 8
    $region53: #{gae_forward.1} parent=1 // pred_fallthru
      _
    // Predicated region
    $region54: #{gae_forward.1} parent=1 // pred_check
      _
    $region55: #{gae_forward.1} parent=1 // pred_check_branch
      %656 = sbr.rel (0) target = $region57
    $region56: #{gae_forward.1} parent=1 // pred_region
      %s658 = ssub.s32 256, 256
      %659 = vsyncadd [#allocation5], %s658
      %s660 = sshll.u32 [#allocation4], 4
      %s661 = int_to_ptr.vmem [resolvable:$true] %s660
      %666 = dma.vmem_to_hbm [thread:$0]  %s661, 256, %s13, [#allocation5], 128, 128, 8
    $region57: #{gae_forward.1} parent=1 // pred_fallthru
      _
    // Predicated region
    $region58: #{gae_forward.1} parent=1 // pred_check
      _
    $region59: #{gae_forward.1} parent=1 // pred_check_branch
      %668 = sbr.rel (0) target = $region61
    $region60: #{gae_forward.1} parent=1 // pred_region
      %669 = dma.done [#allocation3], 256
    $region61: #{gae_forward.1} parent=1 // pred_fallthru
      _
    // Predicated region
    $region62: #{gae_forward.1} parent=1 // pred_check
      _
    $region63: #{gae_forward.1} parent=1 // pred_check_branch
      %671 = sbr.rel (0) target = $region65
    $region64: #{gae_forward.1} parent=1 // pred_region
      %672 = dma.done [#allocation5], 256
    $region65: #{gae_forward.1} parent=1 // pred_fallthru
      _
    %673 = vsyncpa [#allocation3], 1
    %674 = vsyncpa [#allocation5], 1

</llo_original>
